<compile_context>
chip_gen: v5e
topology: v5e:2x2
jax: 0.10.0
libtpu: 0.0.40
codegen_flags: <defaults>
</compile_context>

<pallas_src>
import jax
import jax.numpy as jnp
from jax.experimental import pallas as pl
from jax.experimental.pallas import tpu as pltpu

IN_FEATURES = 32
OUT_FEATURES = 2
LANES = 128
PACK_MIN = LANES // IN_FEATURES       # 4 batch rows per 128-lane input row
PACK_DENSE = LANES // OUT_FEATURES    # 64 batch rows -> lane-dense (128) output rows
SMALL_BATCH_BYTES = 64 * 1024         # below this, skip the standalone pallas_call
DENSE_MIN_BATCH = 4096                # only build the 1 MiB block-diag weight for big batches


def _round_up(n, m):
    return ((n + m - 1) // m) * m


def _domain_fc_kernel(x_ref, w_ref, b_ref, o_ref):
    # x_ref: (tbr, 32*P)  packed input block (P batch rows per VMEM row)
    # w_ref: (32*P, 2*P)  block-diagonal kron(I_P, W^T), resident across the grid
    # b_ref: (1, 2*P)     bias tiled P times, resident
    # o_ref: (tbr, 2*P)   packed logits block
    acc = jnp.dot(x_ref[...], w_ref[...], preferred_element_type=jnp.float32)
    o_ref[...] = (acc + b_ref[...]).astype(o_ref.dtype)


def pack_params(weight, bias, pack, dtype):
    """(2,32) PyTorch-layout weight / (2,) bias -> (32*pack, 2*pack) / (1, 2*pack)."""
    eye = jnp.eye(pack, dtype=dtype)
    w_bd = jnp.kron(eye, weight.astype(dtype).T)
    b_tiled = jnp.tile(bias.astype(jnp.float32), pack).reshape(1, pack * OUT_FEATURES)
    return w_bd, b_tiled


def domain_classifier_forward(x, weight, bias, *, use_pallas=None):
    """Equivalent of DomainClassifier.forward: x @ weight.T + bias.

    x: (B, 32), weight: (2, 32) (PyTorch nn.Linear layout), bias: (2,) -> (B, 2).
    """
    B = x.shape[0]
    itemsize = x.dtype.itemsize

    if use_pallas is None:
        # Small-batch fast path: a standalone kernel launch is pure overhead.
        use_pallas = B * IN_FEATURES * itemsize >= SMALL_BATCH_BYTES
    if not use_pallas:
        return x @ weight.T + bias

    # Pad only the tiny B % 4 remainder (padded rows produce bias-only logits
    # that are sliced off below).  No padding to block multiples.
    pad = (-B) % PACK_MIN
    if pad:
        x = jnp.pad(x, ((0, pad), (0, 0)))
    b_p = B + pad

    # Pick the packing: 64 rows/VMEM-row (fully lane-dense output) when the
    # batch is 64-aligned and big enough to amortize the 1 MiB resident weight,
    # else 4 rows/VMEM-row (lane-dense input, narrow output).
    if b_p % PACK_DENSE == 0 and b_p >= DENSE_MIN_BATCH:
        pack, block_bytes = PACK_DENSE, 2 << 20
    else:
        pack, block_bytes = PACK_MIN, 1 << 20

    lanes_in = pack * IN_FEATURES
    lanes_out = pack * OUT_FEATURES
    n_rows = b_p // pack
    x_packed = x.reshape(n_rows, lanes_in)            # free row-major reshape

    w_bd, b_tiled = pack_params(weight, bias, pack, x.dtype)

    # Tile rows: byte budget per input buffer, capped so the grid has >=2 steps
    # whenever possible (v7x megacore sharding); sublane-aligned (x8).
    tbr_cap = max(8, block_bytes // (lanes_in * itemsize))
    tbr = max(8, min(tbr_cap, _round_up(pl.cdiv(n_rows, 2), 8)))
    grid = (pl.cdiv(n_rows, tbr),)

    cost = pl.CostEstimate(
        flops=2 * b_p * IN_FEATURES * OUT_FEATURES,
        bytes_accessed=(b_p * IN_FEATURES + b_p * OUT_FEATURES
                        + lanes_in * lanes_out) * itemsize,
        transcendentals=0,
    )

    out_packed = pl.pallas_call(
        _domain_fc_kernel,
        out_shape=jax.ShapeDtypeStruct((n_rows, lanes_out), x.dtype),
        grid=grid,
        in_specs=[
            pl.BlockSpec((tbr, lanes_in), lambda i: (i, 0)),
            pl.BlockSpec((lanes_in, lanes_out), lambda i: (0, 0)),  # resident weight
            pl.BlockSpec((1, lanes_out), lambda i: (0, 0)),         # resident bias
        ],
        out_specs=pl.BlockSpec((tbr, lanes_out), lambda i: (i, 0)),
        compiler_params=pltpu.CompilerParams(
            dimension_semantics=("parallel",)),
        cost_estimate=cost,
    )(x_packed, w_bd, b_tiled)

    # (n_rows, 2*pack) -> (B, 2): the row-major reshape is exactly the un-packing.
    return out_packed.reshape(b_p, OUT_FEATURES)[:B]


def init_params(key):
    # Deterministic init mimicking nn.Linear default (uniform in +-1/sqrt(fan_in)).
    k_w, k_b = jax.random.split(key)
    bound = 1.0 / jnp.sqrt(jnp.float32(IN_FEATURES))
    weight = jax.random.uniform(
        k_w, (OUT_FEATURES, IN_FEATURES), jnp.float32, -bound, bound)
    bias = jax.random.uniform(
        k_b, (OUT_FEATURES,), jnp.float32, -bound, bound)
    return weight, bias


if __name__ == "__main__":
    key = jax.random.PRNGKey(0)
    k_p, k1, k2, k3, k4 = jax.random.split(key, 5)
    weight, bias = init_params(k_p)
    fwd = jax.jit(domain_classifier_forward, static_argnames=("use_pallas",))

    def ref_fn(x):
        return x @ weight.T + bias

    # MXU default precision (bf16 passes) may differ slightly between the XLA
    # reference and the Mosaic kernel; tolerance covers that while still
    # catching structural errors (which would be O(1) off).
    TOL = dict(atol=2e-2, rtol=2e-2)

    # 1) Small shape implied by the module (batch=8, hidden=32); force the
    #    Pallas path so the kernel itself is exercised.
    x = jax.random.normal(k1, (8, IN_FEATURES), jnp.float32)
    out = jax.block_until_ready(fwd(x, weight, bias, use_pallas=True))
    assert out.shape == (8, OUT_FEATURES)
    assert jnp.allclose(out, ref_fn(x), **TOL)

    # 2) Batch not a multiple of the 4-row packing (remainder pad path).
    x = jax.random.normal(k2, (10, IN_FEATURES), jnp.float32)
    out = jax.block_until_ready(fwd(x, weight, bias, use_pallas=True))
    assert out.shape == (10, OUT_FEATURES)
    assert jnp.allclose(out, ref_fn(x), **TOL)

    # 3) Misaligned larger batch: ragged last grid block, no whole-array pad.
    x = jax.random.normal(k3, (4100, IN_FEATURES), jnp.float32)
    out = jax.block_until_ready(fwd(x, weight, bias))
    assert out.shape == (4100, OUT_FEATURES)
    assert jnp.allclose(out, ref_fn(x), **TOL)

    # 4) 64-aligned batch: lane-dense output packing, 2 grid steps (megacore).
    x = jax.random.normal(k4, (4096, IN_FEATURES), jnp.float32)
    out = jax.block_until_ready(fwd(x, weight, bias))
    assert out.shape == (4096, OUT_FEATURES)
    assert jnp.allclose(out, ref_fn(x), **TOL)

    print("KERNEL_OK")
</pallas_src>

<mosaic_0001>
module attributes {stable_mosaic.version = 11 : i64} {
  func.func @_domain_fc_kernel(%arg0: i32, %arg1: memref<8x128xf32, #tpu.memory_space<vmem>>, %arg2: memref<128x8xf32, #tpu.memory_space<vmem>>, %arg3: memref<1x8xf32, #tpu.memory_space<vmem>>, %arg4: memref<8x8xf32, #tpu.memory_space<vmem>>) attributes {dimension_semantics = [#tpu.dimension_semantics<parallel>], iteration_bounds = array<i64: 1>, scalar_prefetch = 0 : i64, scratch_operands = 0 : i64, tpu.core_type = #tpu.core_type<tc>, window_params = [{transform_indices = @transform_0, window_bounds = array<i64: 8, 128>}, {pipeline_mode = #tpu.pipeline_mode<synchronous>, transform_indices = @transform_1, window_bounds = array<i64: 128, 8>}, {pipeline_mode = #tpu.pipeline_mode<synchronous>, transform_indices = @transform_2, window_bounds = array<i64: 1, 8>}, {transform_indices = @transform_3, window_bounds = array<i64: 8, 8>}]} {
    %c0 = arith.constant 0 : index
    %c0_0 = arith.constant 0 : index
    %0 = vector.load %arg1[%c0, %c0_0] : memref<8x128xf32, #tpu.memory_space<vmem>>, vector<8x128xf32>
    %c0_1 = arith.constant 0 : index
    %c0_2 = arith.constant 0 : index
    %1 = vector.load %arg2[%c0_1, %c0_2] : memref<128x8xf32, #tpu.memory_space<vmem>>, vector<128x8xf32>
    %cst = arith.constant dense<0.000000e+00> : vector<8x8xf32>
    %2 = tpu.matmul %0, %1, %cst {dimension_numbers = #tpu.dot_dimension_numbers<[1], [0], [0], [1], [0, 0, 1, 1], [], []>} : vector<8x128xf32>, vector<128x8xf32>, vector<8x8xf32> -> vector<8x8xf32>
    %c0_3 = arith.constant 0 : index
    %c0_4 = arith.constant 0 : index
    %3 = vector.load %arg3[%c0_3, %c0_4] : memref<1x8xf32, #tpu.memory_space<vmem>>, vector<1x8xf32>
    %4 = vector.broadcast %3 : vector<1x8xf32> to vector<8x8xf32>
    %5 = arith.addf %2, %4 : vector<8x8xf32>
    %c0_5 = arith.constant 0 : index
    %c0_6 = arith.constant 0 : index
    %6 = vector.load %arg4[%c0_5, %c0_6] : memref<8x8xf32, #tpu.memory_space<vmem>>, vector<8x8xf32>
    tpu.vector_store %arg4[%c0_5, %c0_6], %5 {strides = array<i32>} : memref<8x8xf32, #tpu.memory_space<vmem>>, vector<8x8xf32>,
    return
  }
  func.func @transform_0(%arg0: i32) -> (i32, i32) {
    %c0_i32 = arith.constant 0 : i32
    %c0_i32_0 = arith.constant 0 : i32
    return %arg0, %c0_i32 : i32, i32
  }
  func.func @transform_1(%arg0: i32) -> (i32, i32) {
    %c0_i32 = arith.constant 0 : i32
    %c0_i32_0 = arith.constant 0 : i32
    %c0_i32_1 = arith.constant 0 : i32
    return %c0_i32, %c0_i32_0 : i32, i32
  }
  func.func @transform_2(%arg0: i32) -> (i32, i32) {
    %c0_i32 = arith.constant 0 : i32
    %c0_i32_0 = arith.constant 0 : i32
    %c0_i32_1 = arith.constant 0 : i32
    return %c0_i32, %c0_i32_0 : i32, i32
  }
  func.func @transform_3(%arg0: i32) -> (i32, i32) {
    %c0_i32 = arith.constant 0 : i32
    %c0_i32_0 = arith.constant 0 : i32
    return %arg0, %c0_i32 : i32, i32
  }
}

</mosaic_0001>

<llo_original>
// kernel: tile.8
$region0: #{tile.8}
  #allocation0 [shape = 's32[1]{0}', space=sflag, size = 0x4, scoped, tag = 'scoped memory for tile.8']
  %s0 = inlined_call_operand.vmem [shape: f32[2], index: 0, kind: input, shape index: {}]
  %s1 = inlined_call_operand.vmem [shape: f32[4,2], index: 1, kind: output, shape index: {}]
  // Predicated region
  $region2: #{tile.8} parent=0 // pred_check
    _
  $region3: #{tile.8} parent=0 // pred_check_branch
    %3 = sbr.rel (0) target = $region5
  $region4: #{tile.8} parent=0 // pred_region
    _
  $region5: #{tile.8} parent=0 // pred_fallthru
    _
  %v4 = vld [vmem:[%s0] ss:$0 sm:$0xff]
  %5 = vst [vmem:[%s1] sm:$0xf] %v4

// kernel: tile.9
$region0: #{tile.9}
  %s0 = inlined_call_operand.vmem [shape: f32[4,2], index: 0, kind: input, shape index: {}]
  %s1 = inlined_call_operand.vmem [shape: f32[1,8], index: 1, kind: output, shape index: {}]
  $region1: #{tile.9} parent=0
    #allocation0 [shape = 'u8[4096]{0}', space=vmem, size = 0x1000, scoped, tag = 'scoped mem for output reshape']
    #allocation1 [shape = 'u8[4096]{0}', space=vmem, size = 0x1000, scoped, tag = 'scoped mem for input reshape']
    %s3 = ssub.s32 16, 1
    %v4 = vld [vmem:[%s0] sm:%s3]
    %5 = vst [vmem:[#allocation1] sm:%s3] %v4
    %v6 = vld [vmem:[#allocation1] sm:$0x1]
    %vm7 = vcmask 15360
    %8 = vst.msk [vmem:[#allocation0] sm:$0x1] %vm7, %v6
    %s9 = scalar_lea.vmem [#allocation1], 3
    %v10 = vld [vmem:[%s9] sm:$0x1]
    %11 = vrot.lane.b32.xlu0 %v10, 6
    %v12 = vpop.permute.xlu0 %11
    %vm13 = vcmask 64560
    %14 = vst.msk [vmem:[#allocation0] sm:$0x1] %vm13, %v12
    %s15 = scalar_lea.vmem [#allocation1], 2
    %v16 = vld [vmem:[%s15] sm:$0x1]
    %17 = vrot.lane.b32.xlu0 %v16, 4
    %v18 = vpop.permute.xlu0 %17
    %vm19 = vcmask 48160
    %20 = vst.msk [vmem:[#allocation0] sm:$0x1] %vm19, %v18
    %s21 = scalar_lea.vmem [#allocation1], 1
    %v22 = vld [vmem:[%s21] sm:$0x1]
    %23 = vrot.lane.b32.xlu0 %v22, 2
    %v24 = vpop.permute.xlu0 %23
    %vm25 = vcmask 31760
    %26 = vst.msk [vmem:[#allocation0] sm:$0x1] %vm25, %v24
    %s28 = ssub.s32 2, 1
    %v29 = vld [vmem:[#allocation0] sm:%s28]
    %s31 = ssub.s32 2, 1
    %32 = vst [vmem:[%s1] sm:%s31] %v29

// kernel: domain_classifier_forward.1
$region0: #{domain_classifier_forward.1}
  #allocation0 [shape = 'u32[]', space=smem, size = 0x4, offset = 0x4, fixed_abs, tag = 'smem constant byte address 0x4 - core index']
  #allocation1 [shape = 'u32[72,128]{1,0:T(1,128)}', space=vmem, size = 0x9000, scoped, tag = 'internal scratch']
  %s0 = inlined_call_operand.vmem [shape: f32[2,128], index: 0, kind: input, shape index: {}]
  %s1 = inlined_call_operand.vmem [shape: f32[128,8], index: 1, kind: input, shape index: {}]
  %s2 = inlined_call_operand.vmem [shape: f32[1,8], index: 2, kind: input, shape index: {}]
  %s3 = inlined_call_operand.vmem [shape: f32[2,8], index: 3, kind: output, shape index: {}]
  %s4 = sld [smem:[#allocation0]]
  $region52: #{domain_classifier_forward.1} parent=0
    _
  %s6 = ssub.s32 1, %s4
  %s7 = scalar_select 0, %s6, %s4
  $region1: #{domain_classifier_forward.1} parent=0
    #allocation2 [shape = 'u8[4096]{0}', space=vmem, size = 0x1000, scoped, tag = 'output window, operand 0, single buffered']
    // Predicated region
    $region2: #{domain_classifier_forward.1} parent=1 // pred_check
      _
    $region3: #{domain_classifier_forward.1} parent=1 // pred_check_branch
      %9 = sbr.rel (0) target = $region5
    $region4: #{domain_classifier_forward.1} parent=1 // pred_region
      _
    $region5: #{domain_classifier_forward.1} parent=1 // pred_fallthru
      _
    // Predicated region
    $region6: #{domain_classifier_forward.1} parent=1 // pred_check
      _
    $region7: #{domain_classifier_forward.1} parent=1 // pred_check_branch
      %11 = sbr.rel (0) target = $region9
    $region8: #{domain_classifier_forward.1} parent=1 // pred_region
      _
    $region9: #{domain_classifier_forward.1} parent=1 // pred_fallthru
      _
    // Predicated region
    $region10: #{domain_classifier_forward.1} parent=1 // pred_check
      _
    $region11: #{domain_classifier_forward.1} parent=1 // pred_check_branch
      %13 = sbr.rel (0) target = $region13
    $region12: #{domain_classifier_forward.1} parent=1 // pred_region
      _
    $region13: #{domain_classifier_forward.1} parent=1 // pred_fallthru
      _
    %v14 = vld [vmem:[%s0] sm:$0xff]
    %v15 = vld [vmem:[%s1] sm:$0xff]
    %v16 = vld [vmem:[%s1 + $0x8] sm:$0xff]
    %v17 = vld [vmem:[%s1 + $0x10] sm:$0xff]
    %v18 = vld [vmem:[%s1 + $0x18] sm:$0xff]
    %v19 = vld [vmem:[%s1 + $0x20] sm:$0xff]
    %v20 = vld [vmem:[%s1 + $0x28] sm:$0xff]
    %v21 = vld [vmem:[%s1 + $0x30] sm:$0xff]
    %v22 = vld [vmem:[%s1 + $0x38] sm:$0xff]
    %v23 = vld [vmem:[%s1 + $0x40] sm:$0xff]
    %v24 = vld [vmem:[%s1 + $0x48] sm:$0xff]
    %v25 = vld [vmem:[%s1 + $0x50] sm:$0xff]
    %v26 = vld [vmem:[%s1 + $0x58] sm:$0xff]
    %v27 = vld [vmem:[%s1 + $0x60] sm:$0xff]
    %v28 = vld [vmem:[%s1 + $0x68] sm:$0xff]
    %v29 = vld [vmem:[%s1 + $0x70] sm:$0xff]
    %v30 = vld [vmem:[%s1 + $0x78] sm:$0xff]
    %v31 = vld [vmem:[%s2] sm:$0x1]
    %v33 = vperm.slane %v31, 0
    %35 = vmatpush.msra.mxu0 %v30
    %36 = vmatpush.msra.mxu0 %v29
    %37 = vmatpush.msra.mxu0 %v28
    %38 = vmatpush.msra.mxu0 %v27
    %39 = vmatpush.msra.mxu0 %v26
    %40 = vmatpush.msra.mxu0 %v25
    %41 = vmatpush.msra.mxu0 %v24
    %42 = vmatpush.msra.mxu0 %v23
    %43 = vmatpush.msra.mxu0 %v22
    %44 = vmatpush.msra.mxu0 %v21
    %45 = vmatpush.msra.mxu0 %v20
    %46 = vmatpush.msra.mxu0 %v19
    %47 = vmatpush.msra.mxu0 %v18
    %48 = vmatpush.msra.mxu0 %v17
    %49 = vmatpush.msra.mxu0 %v16
    %50 = vmatpush.msra.mxu0 %v15
    %51 = vmatmul.f32.gmra.mxu0 %v14
    %v52 = vpop.f32.mrf.mxu0
    %v53 = vadd.f32 %v33, %v52
    %54 = vdwg.mxu0
    %vm55 = vcmask 64512
    %56 = vst.msk [vmem:[#allocation2] sm:$0xff] %vm55, %v53
    // Predicated region
    $region14: #{domain_classifier_forward.1} parent=1 // pred_check
      _
    $region15: #{domain_classifier_forward.1} parent=1 // pred_check_branch
      %58 = sbr.rel (0) target = $region17
    $region16: #{domain_classifier_forward.1} parent=1 // pred_region
      // Predicated region
      $region18: #{domain_classifier_forward.1} parent=16 // pred_check
        _
      $region19: #{domain_classifier_forward.1} parent=16 // pred_check_branch
        %60 = sbr.rel (0) target = $region21
      $region20: #{domain_classifier_forward.1} parent=16 // pred_region
        // Predicated region
        $region22: #{domain_classifier_forward.1} parent=20 // pred_check
          _
        $region23: #{domain_classifier_forward.1} parent=20 // pred_check_branch
          %62 = sbr.rel target = $region25
        $region24: #{domain_classifier_forward.1} parent=20 // pred_region
          // Predicated region
          $region37: #{domain_classifier_forward.1} parent=24 // pred_check
            _
          $region38: #{domain_classifier_forward.1} parent=24 // pred_check_branch
            %78 = sbr.rel (0) target = $region40
          $region39: #{domain_classifier_forward.1} parent=24 // pred_region
            %s80 = ssub.s32 4, 1
            loop: start=0, step=1, limit=1
            $region41: #{domain_classifier_forward.1} parent=39 // loop_pre_header
              _
            $region42: #{domain_classifier_forward.1} parent=39 // loop_header
              %s82 = sphi 0, %s86
              %p83 = scmp.ge.s32.totalorder %s82, 1
              %s87 = sphi [#allocation2], [#allocation2]
              %s88 = sphi %s3, %s3
            $region43: #{domain_classifier_forward.1} parent=39 // loop_header_branch
              %85 = sbr.rel (%p83) target = $region47
            $region44: #{domain_classifier_forward.1} parent=39 // loop_body
              %v89 = vld [vmem:[%s87] sm:%s80]
              %90 = vst [vmem:[%s88] sm:%s80] %v89
            $region45: #{domain_classifier_forward.1} parent=39 // loop_footer
              %s86 = sadd.s32 1, %s82
            $region46: #{domain_classifier_forward.1} parent=39 // loop_footer_branch
              %81 = sbr.rel target = $region42
            $region47: #{domain_classifier_forward.1} parent=39 // loop_exit
              _
          $region40: #{domain_classifier_forward.1} parent=24 // pred_fallthru
            _
        $region25: #{domain_classifier_forward.1} parent=20 // pred_fallthru
          _
        // Predicated region
        $region26: #{domain_classifier_forward.1} parent=20 // pred_check
          _
        $region27: #{domain_classifier_forward.1} parent=20 // pred_check_branch
          %64 = sbr.rel (0) target = $region29
        $region28: #{domain_classifier_forward.1} parent=20 // pred_region
          %s66 = ssub.s32 4, 1
          loop: start=0, step=1, limit=1
          $region30: #{domain_classifier_forward.1} parent=28 // loop_pre_header
            _
          $region31: #{domain_classifier_forward.1} parent=28 // loop_header
            %s68 = sphi 0, %s72
            %p69 = scmp.ge.s32.totalorder %s68, 1
            %s73 = sphi [#allocation2], [#allocation2]
            %s74 = sphi %s3, %s3
          $region32: #{domain_classifier_forward.1} parent=28 // loop_header_branch
            %71 = sbr.rel (%p69) target = $region36
          $region33: #{domain_classifier_forward.1} parent=28 // loop_body
            %v75 = vld [vmem:[%s73] sm:%s66]
            %76 = vst [vmem:[%s74] sm:%s66] %v75
          $region34: #{domain_classifier_forward.1} parent=28 // loop_footer
            %s72 = sadd.s32 1, %s68
          $region35: #{domain_classifier_forward.1} parent=28 // loop_footer_branch
            %67 = sbr.rel target = $region31
          $region36: #{domain_classifier_forward.1} parent=28 // loop_exit
            _
        $region29: #{domain_classifier_forward.1} parent=20 // pred_fallthru
          _
      $region21: #{domain_classifier_forward.1} parent=16 // pred_fallthru
        _
      %91 = vnop
    $region17: #{domain_classifier_forward.1} parent=1 // pred_fallthru
      _
    // Predicated region
    $region48: #{domain_classifier_forward.1} parent=1 // pred_check
      _
    $region49: #{domain_classifier_forward.1} parent=1 // pred_check_branch
      %93 = sbr.rel (0) target = $region51
    $region50: #{domain_classifier_forward.1} parent=1 // pred_region
      _
    $region51: #{domain_classifier_forward.1} parent=1 // pred_fallthru
      _

</llo_original>
